<compile_context>
chip_gen: v7x
topology: tpu7x:2x2x1
jax: 0.10.0
libtpu: 0.0.40
codegen_flags: <defaults>
</compile_context>

<pallas_src>
import jax
import jax.numpy as jnp
from jax.experimental import pallas as pl
from jax.experimental.pallas import tpu as pltpu


def mlp_kernel(x_ref, w01_ref, b1_ref, w345_ref, b5_ref, w7_ref, b7_ref, o_ref):
    x = x_ref[...]                                         # (tile_b, 784) bf16
    # fused f0+f1: Linear(784 -> 46, bias); bf16 operands, f32 accumulate
    h = jnp.dot(x, w01_ref[...], preferred_element_type=jnp.float32) + b1_ref[...]
    # f2: ReLU (f32, VPU)
    h = jnp.maximum(h, 0.0)
    # fused f3+f4+f5: Linear(46 -> 10, bias)
    h = jnp.dot(h.astype(jnp.bfloat16), w345_ref[...],
                preferred_element_type=jnp.float32) + b5_ref[...]
    # f6: ReLU
    h = jnp.maximum(h, 0.0)
    # f7: Linear(10 -> 10, bias)
    h = jnp.dot(h.astype(jnp.bfloat16), w7_ref[...],
                preferred_element_type=jnp.float32) + b7_ref[...]
    # f8: LogSoftmax(dim=1), numerically stable, all f32
    m = jnp.max(h, axis=1, keepdims=True)
    lse = jnp.log(jnp.sum(jnp.exp(h - m), axis=1, keepdims=True)) + m
    o_ref[...] = h - lse


def linear_relu_22_forward(x_nchw, params, tile_b=4096):
    B = x_nchw.shape[0]
    # Stream the activation as bf16 (halves kernel-side HBM read bytes).
    x = x_nchw.reshape(B, 784).astype(jnp.bfloat16)

    w0, w1, b1, w3, w4, w5, b5, w7, b7 = params
    # Precompose the bias-free linear chains in f32, then cast MXU operands to bf16.
    w01 = (w0 @ w1).astype(jnp.bfloat16)          # (784, 46)
    w345 = (w3 @ w4 @ w5).astype(jnp.bfloat16)    # (46, 10)
    w7b = w7.astype(jnp.bfloat16)                 # (10, 10)
    b1f = b1.astype(jnp.float32)
    b5f = b5.astype(jnp.float32)
    b7f = b7.astype(jnp.float32)

    # Batch tiling: no jnp.pad copy. tile_b is a multiple of 8 (sublane); the
    # last (possibly partial) block is handled by Pallas (reads padded, writes
    # masked); every op in the kernel is row-wise so that is safe.
    b_ceil8 = max(8, ((B + 7) // 8) * 8)
    tile_b = min(tile_b, b_ceil8)
    tile_b = ((tile_b + 7) // 8) * 8
    # v7x megacore: if a non-trivial batch would be a single grid step, split it
    # in two so the "parallel" axis can shard across both TensorCores.
    if tile_b >= b_ceil8 and b_ceil8 >= 1024:
        tile_b = ((pl.cdiv(b_ceil8, 2) + 7) // 8) * 8
    n_tiles = pl.cdiv(B, tile_b)

    weight_args = (w01, b1f, w345, b5f, w7b, b7f)

    def resident_spec(a):
        # Full-array block, same block index every grid step -> DMA'd once,
        # stays resident in VMEM while x streams through.
        return pl.BlockSpec(a.shape, lambda i: (0,) * a.ndim)

    out = pl.pallas_call(
        mlp_kernel,
        out_shape=jax.ShapeDtypeStruct((B, 10), jnp.float32),
        grid=(n_tiles,),
        in_specs=[pl.BlockSpec((tile_b, 784), lambda i: (i, 0))]
                 + [resident_spec(a) for a in weight_args],
        out_specs=pl.BlockSpec((tile_b, 10), lambda i: (i, 0)),
        compiler_params=pltpu.CompilerParams(
            dimension_semantics=("parallel",),
            vmem_limit_bytes=48 * 1024 * 1024,
        ),
    )(x, *weight_args)
    return out


def reference_forward(x_nchw, params):
    # Pure-JAX f32 reference of the original (unfused) module, for verification.
    w0, w1, b1, w3, w4, w5, b5, w7, b7 = params
    x = x_nchw.reshape(x_nchw.shape[0], 784).astype(jnp.float32)
    h = x @ w0
    h = h @ w1 + b1
    h = jnp.maximum(h, 0.0)
    h = h @ w3
    h = h @ w4
    h = h @ w5 + b5
    h = jnp.maximum(h, 0.0)
    h = h @ w7 + b7
    return jax.nn.log_softmax(h, axis=1)


def init_params(key):
    # Deterministic synthetic init (Kaiming-uniform-like scale, as in nn.Linear).
    def lin(key, fan_in, fan_out, bias):
        kw, kb = jax.random.split(key)
        bound = 1.0 / jnp.sqrt(fan_in)
        # stored directly as (in, out) for x @ W in the kernel
        w = jax.random.uniform(kw, (fan_in, fan_out), jnp.float32, -bound, bound)
        b = (jax.random.uniform(kb, (1, fan_out), jnp.float32, -bound, bound)
             if bias else None)
        return w, b

    keys = jax.random.split(key, 6)
    w0, _ = lin(keys[0], 784, 90, False)
    w1, b1 = lin(keys[1], 90, 46, True)
    w3, _ = lin(keys[2], 46, 45, False)
    w4, _ = lin(keys[3], 45, 34, False)
    w5, b5 = lin(keys[4], 34, 10, True)
    w7, b7 = lin(keys[5], 10, 10, True)
    return (w0, w1, b1, w3, w4, w5, b5, w7, b7)


if __name__ == "__main__":
    key = jax.random.PRNGKey(0)
    k_x, k_p = jax.random.split(key)

    # Small deterministic input consistent with .view(B, 784): (2, 1, 28, 28) NCHW
    x = jax.random.normal(k_x, (2, 1, 28, 28), dtype=jnp.float32)
    params = init_params(k_p)

    out = linear_relu_22_forward(x, params)
    jax.block_until_ready(out)

    assert out.shape == (2, 10)
    assert out.dtype == jnp.float32
    # log-softmax rows should sum (in prob space) to ~1
    assert jnp.allclose(jnp.sum(jnp.exp(out), axis=1), 1.0, atol=1e-3)
    # bf16 MXU operands + weight precomposition vs the unfused f32 reference:
    # tolerance loosened accordingly (K=784 bf16 dot is not bit-exact to f32).
    ref = reference_forward(x, params)
    assert jnp.allclose(out, ref, atol=2e-2, rtol=2e-2)
    print("KERNEL_OK")
</pallas_src>

<mosaic_0001>
module attributes {stable_mosaic.version = 11 : i64} {
  func.func @mlp_kernel(%arg0: i32, %arg1: memref<8x784xbf16, #tpu.memory_space<vmem>>, %arg2: memref<784x46xbf16, #tpu.memory_space<vmem>>, %arg3: memref<1x46xf32, #tpu.memory_space<vmem>>, %arg4: memref<46x10xbf16, #tpu.memory_space<vmem>>, %arg5: memref<1x10xf32, #tpu.memory_space<vmem>>, %arg6: memref<10x10xbf16, #tpu.memory_space<vmem>>, %arg7: memref<1x10xf32, #tpu.memory_space<vmem>>, %arg8: memref<8x10xf32, #tpu.memory_space<vmem>>) attributes {dimension_semantics = [#tpu.dimension_semantics<parallel>], iteration_bounds = array<i64: 1>, scalar_prefetch = 0 : i64, scratch_operands = 0 : i64, tpu.core_type = #tpu.core_type<tc>, window_params = [{transform_indices = @transform_0, window_bounds = array<i64: 8, 784>}, {pipeline_mode = #tpu.pipeline_mode<synchronous>, transform_indices = @transform_1, window_bounds = array<i64: 784, 46>}, {pipeline_mode = #tpu.pipeline_mode<synchronous>, transform_indices = @transform_2, window_bounds = array<i64: 1, 46>}, {pipeline_mode = #tpu.pipeline_mode<synchronous>, transform_indices = @transform_3, window_bounds = array<i64: 46, 10>}, {pipeline_mode = #tpu.pipeline_mode<synchronous>, transform_indices = @transform_4, window_bounds = array<i64: 1, 10>}, {pipeline_mode = #tpu.pipeline_mode<synchronous>, transform_indices = @transform_5, window_bounds = array<i64: 10, 10>}, {pipeline_mode = #tpu.pipeline_mode<synchronous>, transform_indices = @transform_6, window_bounds = array<i64: 1, 10>}, {transform_indices = @transform_7, window_bounds = array<i64: 8, 10>}]} {
    %c0 = arith.constant 0 : index
    %c0_0 = arith.constant 0 : index
    %0 = vector.load %arg1[%c0, %c0_0] : memref<8x784xbf16, #tpu.memory_space<vmem>>, vector<8x784xbf16>
    %c0_1 = arith.constant 0 : index
    %c0_2 = arith.constant 0 : index
    %1 = vector.load %arg2[%c0_1, %c0_2] : memref<784x46xbf16, #tpu.memory_space<vmem>>, vector<784x46xbf16>
    %cst = arith.constant dense<0.000000e+00> : vector<8x46xf32>
    %2 = tpu.matmul %0, %1, %cst {dimension_numbers = #tpu.dot_dimension_numbers<[1], [0], [0], [1], [0, 0, 1, 1], [], []>} : vector<8x784xbf16>, vector<784x46xbf16>, vector<8x46xf32> -> vector<8x46xf32>
    %c0_3 = arith.constant 0 : index
    %c0_4 = arith.constant 0 : index
    %3 = vector.load %arg3[%c0_3, %c0_4] : memref<1x46xf32, #tpu.memory_space<vmem>>, vector<1x46xf32>
    %4 = vector.broadcast %3 : vector<1x46xf32> to vector<8x46xf32>
    %5 = arith.addf %2, %4 : vector<8x46xf32>
    %cst_5 = arith.constant 0.000000e+00 : f32
    %6 = vector.broadcast %cst_5 : f32 to vector<8x46xf32>
    %7 = arith.maximumf %5, %6 : vector<8x46xf32>
    %8 = arith.truncf %7 : vector<8x46xf32> to vector<8x46xbf16>
    %c0_6 = arith.constant 0 : index
    %c0_7 = arith.constant 0 : index
    %9 = vector.load %arg4[%c0_6, %c0_7] : memref<46x10xbf16, #tpu.memory_space<vmem>>, vector<46x10xbf16>
    %cst_8 = arith.constant dense<0.000000e+00> : vector<8x10xf32>
    %10 = tpu.matmul %8, %9, %cst_8 {dimension_numbers = #tpu.dot_dimension_numbers<[1], [0], [0], [1], [0, 0, 1, 1], [], []>} : vector<8x46xbf16>, vector<46x10xbf16>, vector<8x10xf32> -> vector<8x10xf32>
    %c0_9 = arith.constant 0 : index
    %c0_10 = arith.constant 0 : index
    %11 = vector.load %arg5[%c0_9, %c0_10] : memref<1x10xf32, #tpu.memory_space<vmem>>, vector<1x10xf32>
    %12 = vector.broadcast %11 : vector<1x10xf32> to vector<8x10xf32>
    %13 = arith.addf %10, %12 : vector<8x10xf32>
    %cst_11 = arith.constant 0.000000e+00 : f32
    %14 = vector.broadcast %cst_11 : f32 to vector<8x10xf32>
    %15 = arith.maximumf %13, %14 : vector<8x10xf32>
    %16 = arith.truncf %15 : vector<8x10xf32> to vector<8x10xbf16>
    %c0_12 = arith.constant 0 : index
    %c0_13 = arith.constant 0 : index
    %17 = vector.load %arg6[%c0_12, %c0_13] : memref<10x10xbf16, #tpu.memory_space<vmem>>, vector<10x10xbf16>
    %cst_14 = arith.constant dense<0.000000e+00> : vector<8x10xf32>
    %18 = tpu.matmul %16, %17, %cst_14 {dimension_numbers = #tpu.dot_dimension_numbers<[1], [0], [0], [1], [0, 0, 1, 1], [], []>} : vector<8x10xbf16>, vector<10x10xbf16>, vector<8x10xf32> -> vector<8x10xf32>
    %c0_15 = arith.constant 0 : index
    %c0_16 = arith.constant 0 : index
    %19 = vector.load %arg7[%c0_15, %c0_16] : memref<1x10xf32, #tpu.memory_space<vmem>>, vector<1x10xf32>
    %20 = vector.broadcast %19 : vector<1x10xf32> to vector<8x10xf32>
    %21 = arith.addf %18, %20 : vector<8x10xf32>
    %cst_17 = arith.constant dense<0xFF800000> : vector<8xf32>
    %22 = vector.multi_reduction <maximumf>, %21, %cst_17 [1] : vector<8x10xf32> to vector<8xf32>
    %23 = vector.shape_cast %22 : vector<8xf32> to vector<8x1xf32>
    %24 = vector.broadcast %23 : vector<8x1xf32> to vector<8x10xf32>
    %25 = arith.subf %21, %24 : vector<8x10xf32>
    %26 = math.exp %25 : vector<8x10xf32>
    %cst_18 = arith.constant dense<0.000000e+00> : vector<8xf32>
    %27 = vector.multi_reduction <add>, %26, %cst_18 [1] : vector<8x10xf32> to vector<8xf32>
    %28 = vector.shape_cast %27 : vector<8xf32> to vector<8x1xf32>
    %29 = math.log %28 : vector<8x1xf32>
    %30 = arith.addf %29, %23 : vector<8x1xf32>
    %31 = vector.broadcast %30 : vector<8x1xf32> to vector<8x10xf32>
    %32 = arith.subf %21, %31 : vector<8x10xf32>
    %c0_19 = arith.constant 0 : index
    %c0_20 = arith.constant 0 : index
    %33 = vector.load %arg8[%c0_19, %c0_20] : memref<8x10xf32, #tpu.memory_space<vmem>>, vector<8x10xf32>
    tpu.vector_store %arg8[%c0_19, %c0_20], %32 {strides = array<i32>} : memref<8x10xf32, #tpu.memory_space<vmem>>, vector<8x10xf32>,
    return
  }
  func.func @transform_0(%arg0: i32) -> (i32, i32) {
    %c0_i32 = arith.constant 0 : i32
    %c0_i32_0 = arith.constant 0 : i32
    return %arg0, %c0_i32 : i32, i32
  }
  func.func @transform_1(%arg0: i32) -> (i32, i32) {
    %c0_i32 = arith.constant 0 : i32
    %c0_i32_0 = arith.constant 0 : i32
    %c0_i32_1 = arith.constant 0 : i32
    return %c0_i32, %c0_i32_0 : i32, i32
  }
  func.func @transform_2(%arg0: i32) -> (i32, i32) {
    %c0_i32 = arith.constant 0 : i32
    %c0_i32_0 = arith.constant 0 : i32
    %c0_i32_1 = arith.constant 0 : i32
    return %c0_i32, %c0_i32_0 : i32, i32
  }
  func.func @transform_3(%arg0: i32) -> (i32, i32) {
    %c0_i32 = arith.constant 0 : i32
    %c0_i32_0 = arith.constant 0 : i32
    %c0_i32_1 = arith.constant 0 : i32
    return %c0_i32, %c0_i32_0 : i32, i32
  }
  func.func @transform_4(%arg0: i32) -> (i32, i32) {
    %c0_i32 = arith.constant 0 : i32
    %c0_i32_0 = arith.constant 0 : i32
    %c0_i32_1 = arith.constant 0 : i32
    return %c0_i32, %c0_i32_0 : i32, i32
  }
  func.func @transform_5(%arg0: i32) -> (i32, i32) {
    %c0_i32 = arith.constant 0 : i32
    %c0_i32_0 = arith.constant 0 : i32
    %c0_i32_1 = arith.constant 0 : i32
    return %c0_i32, %c0_i32_0 : i32, i32
  }
  func.func @transform_6(%arg0: i32) -> (i32, i32) {
    %c0_i32 = arith.constant 0 : i32
    %c0_i32_0 = arith.constant 0 : i32
    %c0_i32_1 = arith.constant 0 : i32
    return %c0_i32, %c0_i32_0 : i32, i32
  }
  func.func @transform_7(%arg0: i32) -> (i32, i32) {
    %c0_i32 = arith.constant 0 : i32
    %c0_i32_0 = arith.constant 0 : i32
    return %arg0, %c0_i32 : i32, i32
  }
}

</mosaic_0001>

<llo_original>
// kernel: tpu_custom_call.1
$region0: #{tpu_custom_call.1}
  #allocation0 [shape = 'u32[]', space=smem, size = 0x4, offset = 0x4, fixed_abs, tag = 'smem constant byte address 0x4 - core index']
  #allocation1 [shape = 'u32[144,128]{1,0:T(1,128)}', space=vmem, size = 0x12000, scoped, tag = 'internal scratch']
  %s0 = inlined_call_operand.vmem [shape: bf16[2,784], index: 0, kind: input, shape index: {}]
  %s1 = inlined_call_operand.vmem [shape: bf16[784,46], index: 1, kind: input, shape index: {}]
  %s2 = inlined_call_operand.vmem [shape: f32[1,46], index: 2, kind: input, shape index: {}]
  %s3 = inlined_call_operand.vmem [shape: bf16[46,10], index: 3, kind: input, shape index: {}]
  %s4 = inlined_call_operand.vmem [shape: f32[1,10], index: 4, kind: input, shape index: {}]
  %s5 = inlined_call_operand.vmem [shape: bf16[10,10], index: 5, kind: input, shape index: {}]
  %s6 = inlined_call_operand.vmem [shape: f32[1,10], index: 6, kind: input, shape index: {}]
  %s7 = inlined_call_operand.hbm [shape: f32[2,10], index: 7, kind: output, shape index: {}]
  %s8 = sld [smem:[#allocation0]]
  $region38: #{tpu_custom_call.1} parent=0
    _
  %s10 = ssub.s32 1, %s8
  %s11 = scalar_select 0, %s10, %s8
  $region1: #{tpu_custom_call.1} parent=0
    #allocation2 [shape = 'u8[4096]{0}', space=vmem, size = 0x1000, scoped, tag = 'output window, operand 0, single buffered']
    #allocation3 [shape = 's32[1]{0}', space=sflag, size = 0x4, scoped, tag = 'scoped memory for tpu_custom_call.1']
    %12 = vsyncpa [#allocation3], 0
    // Predicated region
    $region2: #{tpu_custom_call.1} parent=1 // pred_check
      _
    $region3: #{tpu_custom_call.1} parent=1 // pred_check_branch
      %14 = sbr.rel (0) target = $region5
    $region4: #{tpu_custom_call.1} parent=1 // pred_region
      _
    $region5: #{tpu_custom_call.1} parent=1 // pred_fallthru
      _
    // Predicated region
    $region6: #{tpu_custom_call.1} parent=1 // pred_check
      _
    $region7: #{tpu_custom_call.1} parent=1 // pred_check_branch
      %16 = sbr.rel (0) target = $region9
    $region8: #{tpu_custom_call.1} parent=1 // pred_region
      _
    $region9: #{tpu_custom_call.1} parent=1 // pred_fallthru
      _
    // Predicated region
    $region10: #{tpu_custom_call.1} parent=1 // pred_check
      _
    $region11: #{tpu_custom_call.1} parent=1 // pred_check_branch
      %18 = sbr.rel (0) target = $region13
    $region12: #{tpu_custom_call.1} parent=1 // pred_region
      _
    $region13: #{tpu_custom_call.1} parent=1 // pred_fallthru
      _
    // Predicated region
    $region14: #{tpu_custom_call.1} parent=1 // pred_check
      _
    $region15: #{tpu_custom_call.1} parent=1 // pred_check_branch
      %20 = sbr.rel (0) target = $region17
    $region16: #{tpu_custom_call.1} parent=1 // pred_region
      _
    $region17: #{tpu_custom_call.1} parent=1 // pred_fallthru
      _
    // Predicated region
    $region18: #{tpu_custom_call.1} parent=1 // pred_check
      _
    $region19: #{tpu_custom_call.1} parent=1 // pred_check_branch
      %22 = sbr.rel (0) target = $region21
    $region20: #{tpu_custom_call.1} parent=1 // pred_region
      _
    $region21: #{tpu_custom_call.1} parent=1 // pred_fallthru
      _
    // Predicated region
    $region22: #{tpu_custom_call.1} parent=1 // pred_check
      _
    $region23: #{tpu_custom_call.1} parent=1 // pred_check_branch
      %24 = sbr.rel (0) target = $region25
    $region24: #{tpu_custom_call.1} parent=1 // pred_region
      _
    $region25: #{tpu_custom_call.1} parent=1 // pred_fallthru
      _
    // Predicated region
    $region26: #{tpu_custom_call.1} parent=1 // pred_check
      _
    $region27: #{tpu_custom_call.1} parent=1 // pred_check_branch
      %26 = sbr.rel (0) target = $region29
    $region28: #{tpu_custom_call.1} parent=1 // pred_region
      _
    $region29: #{tpu_custom_call.1} parent=1 // pred_fallthru
      _
    %v28 = vld [vmem:[%s0] sm:$0x7f]
    %v29 = vld [vmem:[%s0 + $0x7] sm:$0x7f]
    %v30 = vld [vmem:[%s0 + $0xe] sm:$0x7f]
    %v31 = vld [vmem:[%s0 + $0x15] sm:$0x7f]
    %v32 = vld [vmem:[%s1] sm:$0xf]
    %v33 = vld [vmem:[%s1 + $0x4] sm:$0xf]
    %v34 = vld [vmem:[%s1 + $0x8] sm:$0xf]
    %v35 = vld [vmem:[%s1 + $0xc] sm:$0xf]
    %v36 = vld [vmem:[%s1 + $0x10] sm:$0xf]
    %v37 = vld [vmem:[%s1 + $0x14] sm:$0xf]
    %v38 = vld [vmem:[%s1 + $0x18] sm:$0xf]
    %v39 = vld [vmem:[%s1 + $0x1c] sm:$0xf]
    %v40 = vld [vmem:[%s1 + $0x20] sm:$0xf]
    %v41 = vld [vmem:[%s1 + $0x24] sm:$0xf]
    %v42 = vld [vmem:[%s1 + $0x28] sm:$0xf]
    %v43 = vld [vmem:[%s1 + $0x2c] sm:$0xf]
    %v44 = vld [vmem:[%s1 + $0x30] sm:$0xf]
    %v45 = vld [vmem:[%s1 + $0x34] sm:$0xf]
    %v46 = vld [vmem:[%s1 + $0x38] sm:$0xf]
    %v47 = vld [vmem:[%s1 + $0x3c] sm:$0xf]
    %v48 = vld [vmem:[%s1 + $0x40] sm:$0xf]
    %v49 = vld [vmem:[%s1 + $0x44] sm:$0xf]
    %v50 = vld [vmem:[%s1 + $0x48] sm:$0xf]
    %v51 = vld [vmem:[%s1 + $0x4c] sm:$0xf]
    %v52 = vld [vmem:[%s1 + $0x50] sm:$0xf]
    %v53 = vld [vmem:[%s1 + $0x54] sm:$0xf]
    %v54 = vld [vmem:[%s1 + $0x58] sm:$0xf]
    %v55 = vld [vmem:[%s1 + $0x5c] sm:$0xf]
    %v56 = vld [vmem:[%s1 + $0x60] sm:$0xf]
    %v57 = vld [vmem:[%s1 + $0x64] sm:$0xf]
    %v58 = vld [vmem:[%s1 + $0x68] sm:$0xf]
    %v59 = vld [vmem:[%s1 + $0x6c] sm:$0xf]
    %v60 = vld [vmem:[%s1 + $0x70] sm:$0xf]
    %v61 = vld [vmem:[%s1 + $0x74] sm:$0xf]
    %v62 = vld [vmem:[%s1 + $0x78] sm:$0xf]
    %v63 = vld [vmem:[%s1 + $0x7c] sm:$0xf]
    %v64 = vld [vmem:[%s1 + $0x80] sm:$0xf]
    %v65 = vld [vmem:[%s1 + $0x84] sm:$0xf]
    %v66 = vld [vmem:[%s1 + $0x88] sm:$0xf]
    %v67 = vld [vmem:[%s1 + $0x8c] sm:$0xf]
    %v68 = vld [vmem:[%s1 + $0x90] sm:$0xf]
    %v69 = vld [vmem:[%s1 + $0x94] sm:$0xf]
    %v70 = vld [vmem:[%s1 + $0x98] sm:$0xf]
    %v71 = vld [vmem:[%s1 + $0x9c] sm:$0xf]
    %v72 = vld [vmem:[%s1 + $0xa0] sm:$0xf]
    %v73 = vld [vmem:[%s1 + $0xa4] sm:$0xf]
    %v74 = vld [vmem:[%s1 + $0xa8] sm:$0xf]
    %v75 = vld [vmem:[%s1 + $0xac] sm:$0xf]
    %v76 = vld [vmem:[%s1 + $0xb0] sm:$0xf]
    %v77 = vld [vmem:[%s1 + $0xb4] sm:$0xf]
    %v78 = vld [vmem:[%s1 + $0xb8] sm:$0xf]
    %v79 = vld [vmem:[%s1 + $0xbc] sm:$0xf]
    %v80 = vld [vmem:[%s1 + $0xc0] sm:$0xf]
    %v81 = vld [vmem:[%s1 + $0xc4] sm:$0xf]
    %v82 = vld [vmem:[%s1 + $0xc8] sm:$0xf]
    %v83 = vld [vmem:[%s1 + $0xcc] sm:$0xf]
    %v84 = vld [vmem:[%s1 + $0xd0] sm:$0xf]
    %v85 = vld [vmem:[%s1 + $0xd4] sm:$0xf]
    %v86 = vld [vmem:[%s1 + $0xd8] sm:$0xf]
    %v87 = vld [vmem:[%s1 + $0xdc] sm:$0xf]
    %v88 = vld [vmem:[%s1 + $0xe0] sm:$0xf]
    %v89 = vld [vmem:[%s1 + $0xe4] sm:$0xf]
    %v90 = vld [vmem:[%s1 + $0xe8] sm:$0xf]
    %v91 = vld [vmem:[%s1 + $0xec] sm:$0xf]
    %v92 = vld [vmem:[%s1 + $0xf0] sm:$0xf]
    %v93 = vld [vmem:[%s1 + $0xf4] sm:$0xf]
    %v94 = vld [vmem:[%s1 + $0xf8] sm:$0xf]
    %v95 = vld [vmem:[%s1 + $0xfc] sm:$0xf]
    %v96 = vld [vmem:[%s1 + $0x100] sm:$0xf]
    %v97 = vld [vmem:[%s1 + $0x104] sm:$0xf]
    %v98 = vld [vmem:[%s1 + $0x108] sm:$0xf]
    %v99 = vld [vmem:[%s1 + $0x10c] sm:$0xf]
    %v100 = vld [vmem:[%s1 + $0x110] sm:$0xf]
    %v101 = vld [vmem:[%s1 + $0x114] sm:$0xf]
    %v102 = vld [vmem:[%s1 + $0x118] sm:$0xf]
    %v103 = vld [vmem:[%s1 + $0x11c] sm:$0xf]
    %v104 = vld [vmem:[%s1 + $0x120] sm:$0xf]
    %v105 = vld [vmem:[%s1 + $0x124] sm:$0xf]
    %v106 = vld [vmem:[%s1 + $0x128] sm:$0xf]
    %v107 = vld [vmem:[%s1 + $0x12c] sm:$0xf]
    %v108 = vld [vmem:[%s1 + $0x130] sm:$0xf]
    %v109 = vld [vmem:[%s1 + $0x134] sm:$0xf]
    %v110 = vld [vmem:[%s1 + $0x138] sm:$0xf]
    %v111 = vld [vmem:[%s1 + $0x13c] sm:$0xf]
    %v112 = vld [vmem:[%s1 + $0x140] sm:$0xf]
    %v113 = vld [vmem:[%s1 + $0x144] sm:$0xf]
    %v114 = vld [vmem:[%s1 + $0x148] sm:$0xf]
    %v115 = vld [vmem:[%s1 + $0x14c] sm:$0xf]
    %v116 = vld [vmem:[%s1 + $0x150] sm:$0xf]
    %v117 = vld [vmem:[%s1 + $0x154] sm:$0xf]
    %v118 = vld [vmem:[%s1 + $0x158] sm:$0xf]
    %v119 = vld [vmem:[%s1 + $0x15c] sm:$0xf]
    %v120 = vld [vmem:[%s1 + $0x160] sm:$0xf]
    %v121 = vld [vmem:[%s1 + $0x164] sm:$0xf]
    %v122 = vld [vmem:[%s1 + $0x168] sm:$0xf]
    %v123 = vld [vmem:[%s1 + $0x16c] sm:$0xf]
    %v124 = vld [vmem:[%s1 + $0x170] sm:$0xf]
    %v125 = vld [vmem:[%s1 + $0x174] sm:$0xf]
    %v126 = vld [vmem:[%s1 + $0x178] sm:$0xf]
    %v127 = vld [vmem:[%s1 + $0x17c] sm:$0xf]
    %v128 = vld [vmem:[%s1 + $0x180] sm:$0xf]
    %v129 = vld [vmem:[%s1 + $0x184] sm:$0xf]
    %v130 = vld [vmem:[%s2] sm:$0x1]
    %v132 = vlaneseq
    %v133 = vshrl.u32 %v132, 7
    %v134 = vsub.s32 0, %v133
    %v135 = vrot.slane %v130, %v134
    %v141 = vcombine.low %v28, %v29
    %v142 = vcombine.high %v28, %v29
    %v143 = vcombine.low %v30, %v31
    %v144 = vcombine.high %v30, %v31
    %v146 = vunpack.c.l.s4 1966171168
    %v147 = vunpack.c.0.s8 %v146
    %v148 = vlaneseq
    %v149 = vshrl.u32 %v148, 7
    %v150 = vsub.s32 %v147, %v149
    %v151 = vrot.slane %v141, %v150
    %v153 = vunpack.c.l.s4 1966171168
    %v154 = vunpack.c.0.s8 %v153
    %v155 = vlaneseq
    %v156 = vshrl.u32 %v155, 7
    %v157 = vsub.s32 %v154, %v156
    %v158 = vrot.slane %v142, %v157
    %v160 = vunpack.c.l.s4 1966171168
    %v161 = vunpack.c.0.s8 %v160
    %v162 = vlaneseq
    %v163 = vshrl.u32 %v162, 7
    %v164 = vsub.s32 %v161, %v163
    %v165 = vrot.slane %v143, %v164
    %v167 = vunpack.c.l.s4 1966171168
    %v168 = vunpack.c.0.s8 %v167
    %v169 = vlaneseq
    %v170 = vshrl.u32 %v169, 7
    %v171 = vsub.s32 %v168, %v170
    %v172 = vrot.slane %v144, %v171
    %v173 = vcombine.low %v151, %v165
    %v174 = vcombine.high %v151, %v165
    %v175 = vcombine.low %v158, %v172
    %v176 = vcombine.high %v158, %v172
    %v178 = vunpack.c.l.s4 1966171168
    %v179 = vunpack.c.0.s8 %v178
    %v180 = vlaneseq
    %v181 = vshrl.u32 %v180, 7
    %v182 = vsub.s32 %v179, %v181
    %v183 = vrot.slane %v173, %v182
    %v185 = vunpack.c.l.s4 1966171168
    %v186 = vunpack.c.0.s8 %v185
    %v187 = vlaneseq
    %v188 = vshrl.u32 %v187, 7
    %v189 = vsub.s32 %v186, %v188
    %v190 = vrot.slane %v175, %v189
    %v192 = vunpack.c.l.s4 1966171168
    %v193 = vunpack.c.0.s8 %v192
    %v194 = vlaneseq
    %v195 = vshrl.u32 %v194, 7
    %v196 = vsub.s32 %v193, %v195
    %v197 = vrot.slane %v174, %v196
    %v199 = vunpack.c.l.s4 1966171168
    %v200 = vunpack.c.0.s8 %v199
    %v201 = vlaneseq
    %v202 = vshrl.u32 %v201, 7
    %v203 = vsub.s32 %v200, %v202
    %v204 = vrot.slane %v176, %v203
    %v205 = vcombine.high %v183, %v183
    %v206 = vcombine.high %v190, %v190
    %v207 = vcombine.high %v197, %v197
    %v312 = vunpack.c.l.b16 %v32
    %v313 = vunpack.c.l.b16 %v33
    %v314 = vunpack.c.l.b16 %v34
    %v315 = vunpack.c.l.b16 %v35
    %v316 = vunpack.c.l.b16 %v36
    %v317 = vunpack.c.l.b16 %v37
    %v318 = vunpack.c.l.b16 %v38
    %v319 = vunpack.c.l.b16 %v39
    %v320 = vunpack.c.l.b16 %v40
    %v321 = vunpack.c.l.b16 %v41
    %v322 = vunpack.c.l.b16 %v42
    %v323 = vunpack.c.l.b16 %v43
    %v324 = vunpack.c.l.b16 %v44
    %v325 = vunpack.c.l.b16 %v45
    %v326 = vunpack.c.l.b16 %v46
    %v327 = vunpack.c.l.b16 %v47
    %v328 = vunpack.c.l.b16 %v48
    %v329 = vunpack.c.l.b16 %v49
    %v330 = vunpack.c.l.b16 %v50
    %v331 = vunpack.c.l.b16 %v51
    %v332 = vunpack.c.l.b16 %v52
    %v333 = vunpack.c.l.b16 %v53
    %v334 = vunpack.c.l.b16 %v54
    %v335 = vunpack.c.l.b16 %v55
    %v336 = vunpack.c.l.b16 %v56
    %v337 = vunpack.c.l.b16 %v57
    %v338 = vunpack.c.l.b16 %v58
    %v339 = vunpack.c.l.b16 %v59
    %v340 = vunpack.c.l.b16 %v60
    %v341 = vunpack.c.l.b16 %v61
    %v342 = vunpack.c.l.b16 %v62
    %v343 = vunpack.c.l.b16 %v63
    %v344 = vunpack.c.l.b16 %v64
    %v345 = vunpack.c.l.b16 %v65
    %v346 = vunpack.c.l.b16 %v66
    %v347 = vunpack.c.l.b16 %v67
    %v348 = vunpack.c.l.b16 %v68
    %v349 = vunpack.c.l.b16 %v69
    %v350 = vunpack.c.l.b16 %v70
    %v351 = vunpack.c.l.b16 %v71
    %v352 = vunpack.c.l.b16 %v72
    %v353 = vunpack.c.l.b16 %v73
    %v354 = vunpack.c.l.b16 %v74
    %v355 = vunpack.c.l.b16 %v75
    %v356 = vunpack.c.l.b16 %v76
    %v357 = vunpack.c.l.b16 %v77
    %v358 = vunpack.c.l.b16 %v78
    %v359 = vunpack.c.l.b16 %v79
    %v360 = vunpack.c.l.b16 %v80
    %v361 = vunpack.c.l.b16 %v81
    %v362 = vunpack.c.l.b16 %v82
    %v363 = vunpack.c.l.b16 %v83
    %v364 = vunpack.c.l.b16 %v84
    %v365 = vunpack.c.l.b16 %v85
    %v366 = vunpack.c.l.b16 %v86
    %v367 = vunpack.c.l.b16 %v87
    %v368 = vunpack.c.l.b16 %v88
    %v369 = vunpack.c.l.b16 %v89
    %v370 = vunpack.c.l.b16 %v90
    %v371 = vunpack.c.l.b16 %v91
    %v372 = vunpack.c.l.b16 %v92
    %v373 = vunpack.c.l.b16 %v93
    %v374 = vunpack.c.l.b16 %v94
    %v375 = vunpack.c.l.b16 %v95
    %v376 = vunpack.c.l.b16 %v96
    %v377 = vunpack.c.l.b16 %v97
    %v378 = vunpack.c.l.b16 %v98
    %v379 = vunpack.c.l.b16 %v99
    %v380 = vunpack.c.l.b16 %v100
    %v381 = vunpack.c.l.b16 %v101
    %v382 = vunpack.c.l.b16 %v102
    %v383 = vunpack.c.l.b16 %v103
    %v384 = vunpack.c.l.b16 %v104
    %v385 = vunpack.c.l.b16 %v105
    %v386 = vunpack.c.l.b16 %v106
    %v387 = vunpack.c.l.b16 %v107
    %v388 = vunpack.c.l.b16 %v108
    %v389 = vunpack.c.l.b16 %v109
    %v390 = vunpack.c.l.b16 %v110
    %v391 = vunpack.c.l.b16 %v111
    %v392 = vunpack.c.l.b16 %v112
    %v393 = vunpack.c.l.b16 %v113
    %v394 = vunpack.c.l.b16 %v114
    %v395 = vunpack.c.l.b16 %v115
    %v396 = vunpack.c.l.b16 %v116
    %v397 = vunpack.c.l.b16 %v117
    %v398 = vunpack.c.l.b16 %v118
    %v399 = vunpack.c.l.b16 %v119
    %v400 = vunpack.c.l.b16 %v120
    %v401 = vunpack.c.l.b16 %v121
    %v402 = vunpack.c.l.b16 %v122
    %v403 = vunpack.c.l.b16 %v123
    %v404 = vunpack.c.l.b16 %v124
    %v405 = vunpack.c.l.b16 %v125
    %v406 = vunpack.c.l.b16 %v126
    %v407 = vunpack.c.l.b16 %v127
    %v408 = vunpack.c.l.b16 %v128
    %v409 = vunpack.c.l.b16 %v129
    %v410 = vpack.c.b16 %v313, %v312
    %v411 = vpack.c.b16 %v315, %v314
    %v412 = vpack.c.b16 %v317, %v316
    %v413 = vpack.c.b16 %v319, %v318
    %v414 = vpack.c.b16 %v321, %v320
    %v415 = vpack.c.b16 %v323, %v322
    %v416 = vpack.c.b16 %v325, %v324
    %v417 = vpack.c.b16 %v327, %v326
    %v418 = vpack.c.b16 %v329, %v328
    %v419 = vpack.c.b16 %v331, %v330
    %v420 = vpack.c.b16 %v333, %v332
    %v421 = vpack.c.b16 %v335, %v334
    %v422 = vpack.c.b16 %v337, %v336
    %v423 = vpack.c.b16 %v339, %v338
    %v424 = vpack.c.b16 %v341, %v340
    %v425 = vpack.c.b16 %v343, %v342
    %v426 = vpack.c.b16 %v345, %v344
    %v427 = vpack.c.b16 %v347, %v346
    %v428 = vpack.c.b16 %v349, %v348
    %v429 = vpack.c.b16 %v351, %v350
    %v430 = vpack.c.b16 %v353, %v352
    %v431 = vpack.c.b16 %v355, %v354
    %v432 = vpack.c.b16 %v357, %v356
    %v433 = vpack.c.b16 %v359, %v358
    %v434 = vpack.c.b16 %v361, %v360
    %v435 = vpack.c.b16 %v363, %v362
    %v436 = vpack.c.b16 %v365, %v364
    %v437 = vpack.c.b16 %v367, %v366
    %v438 = vpack.c.b16 %v369, %v368
    %v439 = vpack.c.b16 %v371, %v370
    %v440 = vpack.c.b16 %v373, %v372
    %v441 = vpack.c.b16 %v375, %v374
    %v442 = vpack.c.b16 %v377, %v376
    %v443 = vpack.c.b16 %v379, %v378
    %v444 = vpack.c.b16 %v381, %v380
    %v445 = vpack.c.b16 %v383, %v382
    %v446 = vpack.c.b16 %v385, %v384
    %v447 = vpack.c.b16 %v387, %v386
    %v448 = vpack.c.b16 %v389, %v388
    %v449 = vpack.c.b16 %v391, %v390
    %v450 = vpack.c.b16 %v393, %v392
    %v451 = vpack.c.b16 %v395, %v394
    %v452 = vpack.c.b16 %v397, %v396
    %v453 = vpack.c.b16 %v399, %v398
    %v454 = vpack.c.b16 %v401, %v400
    %v455 = vpack.c.b16 %v403, %v402
    %v456 = vpack.c.b16 %v405, %v404
    %v457 = vpack.c.b16 %v407, %v406
    %v458 = vpack.c.b16 %v409, %v408
    %vm508 = vcmask 130048
    %v510 = vsel %vm508, %v206, 0
    %512 = vmatprep.subr.bf16.mxu0 0
    %513 = vmatpush1.bf16.msra.mxu0 %v410
    %514 = vmatprep.subr.bf16.mxu0 0
    %515 = vmatpush1.bf16.msra.mxu0 %v411
    %516 = vmatprep.subr.bf16.mxu0 0
    %517 = vmatpush1.bf16.msra.mxu0 %v412
    %518 = vmatprep.subr.bf16.mxu0 0
    %519 = vmatpush1.bf16.msra.mxu0 %v413
    %520 = vmatprep.subr.bf16.mxu0 0
    %521 = vmatpush1.bf16.msra.mxu0 %v414
    %522 = vmatprep.subr.bf16.mxu0 0
    %523 = vmatpush1.bf16.msra.mxu0 %v415
    %524 = vmatprep.subr.bf16.mxu0 0
    %525 = vmatpush1.bf16.msra.mxu0 %v416
    %526 = vmatprep.subr.bf16.mxu0 0
    %527 = vmatpush1.bf16.msra.mxu0 %v417
    %528 = vmatprep.subr.bf16.mxu0 0
    %529 = vmatpush1.bf16.msra.mxu0 %v418
    %530 = vmatprep.subr.bf16.mxu0 0
    %531 = vmatpush1.bf16.msra.mxu0 %v419
    %532 = vmatprep.subr.bf16.mxu0 0
    %533 = vmatpush1.bf16.msra.mxu0 %v420
    %534 = vmatprep.subr.bf16.mxu0 0
    %535 = vmatpush1.bf16.msra.mxu0 %v421
    %536 = vmatprep.subr.bf16.mxu0 0
    %537 = vmatpush1.bf16.msra.mxu0 %v422
    %538 = vmatprep.subr.bf16.mxu0 0
    %539 = vmatpush1.bf16.msra.mxu0 %v423
    %540 = vmatprep.subr.bf16.mxu0 0
    %541 = vmatpush1.bf16.msra.mxu0 %v424
    %542 = vmatprep.subr.bf16.mxu0 0
    %543 = vmatpush1.bf16.msra.mxu0 %v425
    %544 = vmatprep.mubr.bf16.mxu0 %v197
    %545 = vmatmul.mubr.bf16.gmra.mrb[0].mxu0 %v183
    %v546 = vpop.f32.mrb[0].mxu0
    %v547 = vadd.f32 %v135, %v546
    %v548 = vpop.f32.mrb[0].mxu0
    %v549 = vpop.f32.mrb[0].mxu0
    %v550 = vpop.f32.mrb[0].mxu0
    %551 = vdwg.mxu0
    %552 = vmatprep.subr.bf16.mxu0 0
    %553 = vmatpush1.bf16.msra.mxu0 %v426
    %554 = vmatprep.subr.bf16.mxu0 0
    %555 = vmatpush1.bf16.msra.mxu0 %v427
    %556 = vmatprep.subr.bf16.mxu0 0
    %557 = vmatpush1.bf16.msra.mxu0 %v428
    %558 = vmatprep.subr.bf16.mxu0 0
    %559 = vmatpush1.bf16.msra.mxu0 %v429
    %560 = vmatprep.subr.bf16.mxu0 0
    %561 = vmatpush1.bf16.msra.mxu0 %v430
    %562 = vmatprep.subr.bf16.mxu0 0
    %563 = vmatpush1.bf16.msra.mxu0 %v431
    %564 = vmatprep.subr.bf16.mxu0 0
    %565 = vmatpush1.bf16.msra.mxu0 %v432
    %566 = vmatprep.subr.bf16.mxu0 0
    %567 = vmatpush1.bf16.msra.mxu0 %v433
    %568 = vmatprep.subr.bf16.mxu0 0
    %569 = vmatpush1.bf16.msra.mxu0 %v434
    %570 = vmatprep.subr.bf16.mxu0 0
    %571 = vmatpush1.bf16.msra.mxu0 %v435
    %572 = vmatprep.subr.bf16.mxu0 0
    %573 = vmatpush1.bf16.msra.mxu0 %v436
    %574 = vmatprep.subr.bf16.mxu0 0
    %575 = vmatpush1.bf16.msra.mxu0 %v437
    %576 = vmatprep.subr.bf16.mxu0 0
    %577 = vmatpush1.bf16.msra.mxu0 %v438
    %578 = vmatprep.subr.bf16.mxu0 0
    %579 = vmatpush1.bf16.msra.mxu0 %v439
    %580 = vmatprep.subr.bf16.mxu0 0
    %581 = vmatpush1.bf16.msra.mxu0 %v440
    %582 = vmatprep.subr.bf16.mxu0 0
    %583 = vmatpush1.bf16.msra.mxu0 %v441
    %584 = vmatprep.mubr.bf16.mxu0 %v207
    %585 = vmatmul.mubr.bf16.gmra.mrb[0].mxu0 %v205
    %v586 = vpop.f32.mrb[0].mxu0
    %v587 = vadd.f32 %v547, %v586
    %v588 = vpop.f32.mrb[0].mxu0
    %v589 = vpop.f32.mrb[0].mxu0
    %v590 = vpop.f32.mrb[0].mxu0
    %591 = vdwg.mxu0
    %592 = vmatprep.subr.bf16.mxu0 0
    %593 = vmatpush1.bf16.msra.mxu0 %v442
    %594 = vmatprep.subr.bf16.mxu0 0
    %595 = vmatpush1.bf16.msra.mxu0 %v443
    %596 = vmatprep.subr.bf16.mxu0 0
    %597 = vmatpush1.bf16.msra.mxu0 %v444
    %598 = vmatprep.subr.bf16.mxu0 0
    %599 = vmatpush1.bf16.msra.mxu0 %v445
    %600 = vmatprep.subr.bf16.mxu0 0
    %601 = vmatpush1.bf16.msra.mxu0 %v446
    %602 = vmatprep.subr.bf16.mxu0 0
    %603 = vmatpush1.bf16.msra.mxu0 %v447
    %604 = vmatprep.subr.bf16.mxu0 0
    %605 = vmatpush1.bf16.msra.mxu0 %v448
    %606 = vmatprep.subr.bf16.mxu0 0
    %607 = vmatpush1.bf16.msra.mxu0 %v449
    %608 = vmatprep.subr.bf16.mxu0 0
    %609 = vmatpush1.bf16.msra.mxu0 %v450
    %610 = vmatprep.subr.bf16.mxu0 0
    %611 = vmatpush1.bf16.msra.mxu0 %v451
    %612 = vmatprep.subr.bf16.mxu0 0
    %613 = vmatpush1.bf16.msra.mxu0 %v452
    %614 = vmatprep.subr.bf16.mxu0 0
    %615 = vmatpush1.bf16.msra.mxu0 %v453
    %616 = vmatprep.subr.bf16.mxu0 0
    %617 = vmatpush1.bf16.msra.mxu0 %v454
    %618 = vmatprep.subr.bf16.mxu0 0
    %619 = vmatpush1.bf16.msra.mxu0 %v455
    %620 = vmatprep.subr.bf16.mxu0 0
    %621 = vmatpush1.bf16.msra.mxu0 %v456
    %622 = vmatprep.subr.bf16.mxu0 0
    %623 = vmatpush1.bf16.msra.mxu0 %v457
    %624 = vmatprep.mubr.bf16.mxu0 %v204
    %625 = vmatmul.mubr.bf16.gmra.mrb[0].mxu0 %v190
    %v626 = vpop.f32.mrb[0].mxu0
    %v627 = vadd.f32 %v587, %v626
    %v628 = vpop.f32.mrb[0].mxu0
    %v629 = vpop.f32.mrb[0].mxu0
    %v630 = vpop.f32.mrb[0].mxu0
    %631 = vdwg.mxu0
    %632 = vmatprep.subr.bf16.mxu0 0
    %633 = vmatpush1.bf16.msra.mxu0 %v458
    %634 = vmatprep.subr.bf16.mxu0 0
    %635 = vmatpush1.bf16.msra.mxu0 0
    %636 = vmatprep.subr.bf16.mxu0 0
    %637 = vmatpush1.bf16.msra.mxu0 0
    %638 = vmatprep.subr.bf16.mxu0 0
    %639 = vmatpush1.bf16.msra.mxu0 0
    %640 = vmatprep.subr.bf16.mxu0 0
    %641 = vmatpush1.bf16.msra.mxu0 0
    %642 = vmatprep.subr.bf16.mxu0 0
    %643 = vmatpush1.bf16.msra.mxu0 0
    %644 = vmatprep.subr.bf16.mxu0 0
    %645 = vmatpush1.bf16.msra.mxu0 0
    %646 = vmatprep.subr.bf16.mxu0 0
    %647 = vmatpush1.bf16.msra.mxu0 0
    %648 = vmatprep.subr.bf16.mxu0 0
    %649 = vmatpush1.bf16.msra.mxu0 0
    %650 = vmatprep.subr.bf16.mxu0 0
    %651 = vmatpush1.bf16.msra.mxu0 0
    %652 = vmatprep.subr.bf16.mxu0 0
    %653 = vmatpush1.bf16.msra.mxu0 0
    %654 = vmatprep.subr.bf16.mxu0 0
    %655 = vmatpush1.bf16.msra.mxu0 0
    %656 = vmatprep.subr.bf16.mxu0 0
    %657 = vmatpush1.bf16.msra.mxu0 0
    %658 = vmatprep.subr.bf16.mxu0 0
    %659 = vmatpush1.bf16.msra.mxu0 0
    %660 = vmatprep.subr.bf16.mxu0 0
    %661 = vmatpush1.bf16.msra.mxu0 0
    %662 = vmatprep.subr.bf16.mxu0 0
    %663 = vmatpush1.bf16.msra.mxu0 0
    %664 = vmatprep.mubr.bf16.mxu0 0
    %665 = vmatmul.mubr.bf16.gmra.mrb[0].mxu0 %v510
    %v666 = vpop.f32.mrb[0].mxu0
    %v667 = vadd.f32 %v627, %v666
    %v668 = vpop.f32.mrb[0].mxu0
    %v669 = vpop.f32.mrb[0].mxu0
    %v670 = vpop.f32.mrb[0].mxu0
    %671 = vdwg.mxu0
    %v672 = vmax.f32 %v667, 0.0
    %v673 = vpack.c.bf16 %v672, %v672
    %v674 = vld [vmem:[%s3] sm:$0xf]
    %v675 = vld [vmem:[%s3 + $0x4] sm:$0xf]
    %v676 = vld [vmem:[%s3 + $0x8] sm:$0xf]
    %v677 = vld [vmem:[%s3 + $0xc] sm:$0xf]
    %v678 = vld [vmem:[%s3 + $0x10] sm:$0xf]
    %v679 = vld [vmem:[%s3 + $0x14] sm:$0x7]
    %v680 = vld [vmem:[%s4] sm:$0x1]
    %v682 = vlaneseq
    %v683 = vshrl.u32 %v682, 7
    %v684 = vsub.s32 0, %v683
    %v685 = vrot.slane %v680, %v684
    %v693 = vunpack.c.l.b16 %v674
    %v694 = vunpack.c.l.b16 %v675
    %v695 = vunpack.c.l.b16 %v676
    %v696 = vunpack.c.l.b16 %v677
    %v697 = vunpack.c.l.b16 %v678
    %v698 = vunpack.c.l.b16 %v679
    %v699 = vpack.c.b16 %v694, %v693
    %v700 = vpack.c.b16 %v696, %v695
    %v701 = vpack.c.b16 %v698, %v697
    %vm704 = vcmask 375808
    %v706 = vsel %vm704, %v673, 0
    %vm708 = vcmask 1046528
    %v710 = vsel %vm708, %v701, 0
    %712 = vmatprep.subr.bf16.mxu0 0
    %713 = vmatpush1.bf16.msra.mxu0 %v699
    %714 = vmatprep.subr.bf16.mxu0 0
    %715 = vmatpush1.bf16.msra.mxu0 %v700
    %716 = vmatprep.subr.bf16.mxu0 0
    %717 = vmatpush1.bf16.msra.mxu0 %v710
    %718 = vmatprep.subr.bf16.mxu0 0
    %719 = vmatpush1.bf16.msra.mxu0 0
    %720 = vmatprep.subr.bf16.mxu0 0
    %721 = vmatpush1.bf16.msra.mxu0 0
    %722 = vmatprep.subr.bf16.mxu0 0
    %723 = vmatpush1.bf16.msra.mxu0 0
    %724 = vmatprep.subr.bf16.mxu0 0
    %725 = vmatpush1.bf16.msra.mxu0 0
    %726 = vmatprep.subr.bf16.mxu0 0
    %727 = vmatpush1.bf16.msra.mxu0 0
    %728 = vmatprep.subr.bf16.mxu0 0
    %729 = vmatpush1.bf16.msra.mxu0 0
    %730 = vmatprep.subr.bf16.mxu0 0
    %731 = vmatpush1.bf16.msra.mxu0 0
    %732 = vmatprep.subr.bf16.mxu0 0
    %733 = vmatpush1.bf16.msra.mxu0 0
    %734 = vmatprep.subr.bf16.mxu0 0
    %735 = vmatpush1.bf16.msra.mxu0 0
    %736 = vmatprep.subr.bf16.mxu0 0
    %737 = vmatpush1.bf16.msra.mxu0 0
    %738 = vmatprep.subr.bf16.mxu0 0
    %739 = vmatpush1.bf16.msra.mxu0 0
    %740 = vmatprep.subr.bf16.mxu0 0
    %741 = vmatpush1.bf16.msra.mxu0 0
    %742 = vmatprep.subr.bf16.mxu0 0
    %743 = vmatpush1.bf16.msra.mxu0 0
    %744 = vmatprep.mubr.bf16.mxu0 0
    %745 = vmatmul.mubr.bf16.gmra.mrb[0].mxu0 %v706
    %v746 = vpop.f32.mrb[0].mxu0
    %v747 = vadd.f32 %v685, %v746
    %v748 = vpop.f32.mrb[0].mxu0
    %v749 = vpop.f32.mrb[0].mxu0
    %v750 = vpop.f32.mrb[0].mxu0
    %751 = vdwg.mxu0
    %v752 = vmax.f32 %v747, 0.0
    %v753 = vpack.c.bf16 %v752, %v752
    %v754 = vld [vmem:[%s5] sm:$0xf]
    %v755 = vld [vmem:[%s5 + $0x4] sm:$0x1]
    %v756 = vld [vmem:[%s6] sm:$0x1]
    %v758 = vlaneseq
    %v759 = vshrl.u32 %v758, 7
    %v760 = vsub.s32 0, %v759
    %v761 = vrot.slane %v756, %v760
    %v765 = vunpack.c.l.b16 %v754
    %v766 = vunpack.c.l.b16 %v755
    %v767 = vpack.c.b16 %v766, %v765
    %vm768 = vcmask 80896
    %v770 = vsel %vm768, %v753, 0
    %vm772 = vcmask 1044480
    %v774 = vsel %vm772, %v767, 0
    %776 = vmatprep.subr.bf16.mxu0 0
    %777 = vmatpush1.bf16.msra.mxu0 %v774
    %778 = vmatprep.subr.bf16.mxu0 0
    %779 = vmatpush1.bf16.msra.mxu0 0
    %780 = vmatprep.subr.bf16.mxu0 0
    %781 = vmatpush1.bf16.msra.mxu0 0
    %782 = vmatprep.subr.bf16.mxu0 0
    %783 = vmatpush1.bf16.msra.mxu0 0
    %784 = vmatprep.subr.bf16.mxu0 0
    %785 = vmatpush1.bf16.msra.mxu0 0
    %786 = vmatprep.subr.bf16.mxu0 0
    %787 = vmatpush1.bf16.msra.mxu0 0
    %788 = vmatprep.subr.bf16.mxu0 0
    %789 = vmatpush1.bf16.msra.mxu0 0
    %790 = vmatprep.subr.bf16.mxu0 0
    %791 = vmatpush1.bf16.msra.mxu0 0
    %792 = vmatprep.subr.bf16.mxu0 0
    %793 = vmatpush1.bf16.msra.mxu0 0
    %794 = vmatprep.subr.bf16.mxu0 0
    %795 = vmatpush1.bf16.msra.mxu0 0
    %796 = vmatprep.subr.bf16.mxu0 0
    %797 = vmatpush1.bf16.msra.mxu0 0
    %798 = vmatprep.subr.bf16.mxu0 0
    %799 = vmatpush1.bf16.msra.mxu0 0
    %800 = vmatprep.subr.bf16.mxu0 0
    %801 = vmatpush1.bf16.msra.mxu0 0
    %802 = vmatprep.subr.bf16.mxu0 0
    %803 = vmatpush1.bf16.msra.mxu0 0
    %804 = vmatprep.subr.bf16.mxu0 0
    %805 = vmatpush1.bf16.msra.mxu0 0
    %806 = vmatprep.subr.bf16.mxu0 0
    %807 = vmatpush1.bf16.msra.mxu0 0
    %808 = vmatprep.mubr.bf16.mxu0 0
    %809 = vmatmul.mubr.bf16.gmra.mrb[0].mxu0 %v770
    %v810 = vpop.f32.mrb[0].mxu0
    %v811 = vadd.f32 %v761, %v810
    %v812 = vpop.f32.mrb[0].mxu0
    %v813 = vpop.f32.mrb[0].mxu0
    %v814 = vpop.f32.mrb[0].mxu0
    %815 = vdwg.mxu0
    %v816 = vsel %vm768, %v811, -inf
    %817 = vmax.xlane.f32.xlu0 %v816
    %v818 = vpop.xlane.xlu0 %817
    %v819 = vsub.f32 %v811, %v818
    %v820 = vmul.f32 %v819, 1.442695
    %v821 = vpow.pop %v820
    %v822 = vsel %vm768, %v821, 0.0
    %823 = vadd.xlane.f32.xlu0 %v822
    %v824 = vpop.xlane.xlu0 %823
    %v825 = vlog2.pop %v824
    %v826 = vmul.f32 %v825, 0.6931472
    %v827 = vadd.f32 %v826, %v818
    %v828 = vsub.f32 %v811, %v827
    %829 = vst.msk [vmem:[#allocation2] sm:$0xff] %vm768, %v828
    // Predicated region
    $region30: #{tpu_custom_call.1} parent=1 // pred_check
      _
    $region31: #{tpu_custom_call.1} parent=1 // pred_check_branch
      %831 = sbr.rel (0) target = $region33
    $region32: #{tpu_custom_call.1} parent=1 // pred_region
      %s833 = ssub.s32 128, 32
      %834 = vsyncadd [#allocation3], %s833
      %s835 = sshll.u32 [#allocation2], 4
      %s836 = int_to_ptr.vmem [resolvable:$true] %s835
      %841 = dma.vmem_to_hbm [thread:$0]  %s836, 32, %s7, [#allocation3], 32, 32, 2
    $region33: #{tpu_custom_call.1} parent=1 // pred_fallthru
      _
    // Predicated region
    $region34: #{tpu_custom_call.1} parent=1 // pred_check
      _
    $region35: #{tpu_custom_call.1} parent=1 // pred_check_branch
      %843 = sbr.rel (0) target = $region37
    $region36: #{tpu_custom_call.1} parent=1 // pred_region
      %844 = dma.done [#allocation3], 128
    $region37: #{tpu_custom_call.1} parent=1 // pred_fallthru
      _
    %845 = vsyncpa [#allocation3], 1

</llo_original>
